<compile_context>
chip_gen: v6e
topology: v6e:2x2x1
jax: 0.10.0
libtpu: 0.0.40
codegen_flags: <defaults>
</compile_context>

<pallas_src>
import functools

import numpy as np

import jax
import jax.numpy as jnp
from jax.experimental import pallas as pl
from jax.experimental.pallas import tpu as pltpu


def _round_up(x: int, m: int) -> int:
    return ((x + m - 1) // m) * m


@functools.lru_cache(maxsize=16)
def _dft_window_matrix(n_fft: int, hop: int) -> np.ndarray:
    """Window-folded one-sided DFT, transposed, hop-blocked column layout.

    Returns (2*F_pad, J*hop_pad) float32 with
      wt[f,         j*hop_pad + r] =  cos(2*pi*f*(j*hop+r)/n_fft) * hann[j*hop+r]
      wt[F_pad + f, j*hop_pad + r] = -sin(2*pi*f*(j*hop+r)/n_fft) * hann[j*hop+r]
    and zeros for r >= hop, j*hop + r >= n_fft, or f >= F.
    """
    F = n_fft // 2 + 1
    F_pad = _round_up(F, 8)
    hop_pad = _round_up(hop, 8)
    J = -(-n_fft // hop)
    K = J * hop_pad

    col = np.arange(K, dtype=np.int64)
    j = col // hop_pad
    r = col % hop_pad
    n = j * hop + r
    valid = (r < hop) & (n < n_fft)
    n_c = np.where(valid, n, 0)

    # periodic Hann (torch.hann_window default)
    win = 0.5 - 0.5 * np.cos(
        2.0 * np.pi * np.arange(n_fft, dtype=np.float64) / n_fft)
    w_col = np.where(valid, win[n_c], 0.0)                          # (K,)

    f = np.arange(F, dtype=np.int64)
    # angles via (f*n) mod n_fft: exact for any realistic n_fft
    ang = (2.0 * np.pi / n_fft) * ((f[:, None] * n_c[None, :]) % n_fft)

    wt = np.zeros((2 * F_pad, K), np.float32)
    wt[:F, :] = (np.cos(ang) * w_col[None, :]).astype(np.float32)
    wt[F_pad:F_pad + F, :] = (-np.sin(ang) * w_col[None, :]).astype(np.float32)
    return wt


def _make_kernel(F, F_pad, hop_pad, J, tile_t, out_bt):
    def kernel(wt_ref, fb_ref, strip_ref, out_ref, fbuf_ref):
        # wt_ref    : (2*F_pad, K)           bf16  window-folded DFT (grid-invariant)
        # fb_ref    : (F_pad, 1)             f32   learnable filterbank (padded)
        # strip_ref : (hop_pad, tile_t+J-1)  f32   hop-strided waveform strip
        # out_ref   : (F, out_bt)            f32   |STFT| * filterbank  (freq, time)
        # fbuf_ref  : (J*hop_pad, tile_t)    bf16  scratch frame tile
        s = strip_ref[...]
        for j in range(J):  # static unroll; frame tap n = j*hop + r <-> strip[r, c+j]
            fbuf_ref[j * hop_pad:(j + 1) * hop_pad, :] = (
                s[:, j:j + tile_t].astype(fbuf_ref.dtype))
        res = jnp.dot(wt_ref[...], fbuf_ref[...],
                      preferred_element_type=jnp.float32)       # (2*F_pad, tile_t)
        real = res[:F_pad, :]
        imag = res[F_pad:, :]
        mag = jnp.sqrt(real * real + imag * imag)               # f32 VPU/EUP
        out = mag * fb_ref[...]                                  # (F_pad, tile_t)
        out_ref[...] = out[:F, :out_bt].astype(out_ref.dtype)
    return kernel


@functools.partial(jax.jit, static_argnames=("n_fft", "hop_length", "tile_t"))
def learnable_stft(wav, filterbank, *, n_fft, hop_length, tile_t=256):
    """wav: (B, 1, T) float32; filterbank: (n_fft//2+1,) float32.
    Returns (B, n_fft//2+1, 1 + T//hop_length) float32."""
    B, _, T = wav.shape
    hop = int(hop_length)
    F = n_fft // 2 + 1
    pad = n_fft // 2
    if T <= pad:
        raise ValueError("T must be > n_fft//2 for center=True reflect padding")

    F_pad = _round_up(F, 8)
    hop_pad = _round_up(hop, 8)
    J = -(-n_fft // hop)
    K = J * hop_pad

    n_frames = 1 + T // hop
    TT = _round_up(max(int(tile_t), 128), 128)
    TT = min(TT, _round_up(n_frames, 128))
    n_t = -(-n_frames // TT)
    out_bt = min(TT, n_frames)          # full time dim for short audio, else TT
    W = TT + J - 1                      # strip columns needed per time tile

    # --- waveform -> center-padded signal (torch.stft center=True, reflect) ---
    x = wav[:, 0, :].astype(jnp.float32)
    x = jnp.pad(x, ((0, 0), (pad, pad)), mode="reflect")
    L_need = ((n_t - 1) * TT + (W - 1)) * hop + hop_pad
    if L_need > T + 2 * pad:
        x = jnp.pad(x, ((0, 0), (0, L_need - (T + 2 * pad))))

    # --- hop-strided per-tile strips (~1x waveform; NO n_fft/hop expansion) ---
    idx = ((jnp.arange(n_t, dtype=jnp.int32)[:, None, None] * TT
            + jnp.arange(W, dtype=jnp.int32)[None, None, :]) * hop
           + jnp.arange(hop_pad, dtype=jnp.int32)[None, :, None])
    strips = x[:, idx]                                   # (B, n_t, hop_pad, W) f32

    wt = jnp.asarray(_dft_window_matrix(n_fft, hop), dtype=jnp.bfloat16)
    fb = jnp.zeros((F_pad, 1), jnp.float32).at[:F, 0].set(
        filterbank.astype(jnp.float32))

    kernel = _make_kernel(F, F_pad, hop_pad, J, TT, out_bt)

    # VMEM budget (double-buffered blocks + frame scratch); raise the scoped
    # limit above the 32 MiB default only when a large n_fft needs it.
    vmem_need = (2 * (2 * F_pad) * K * 2 + 2 * hop_pad * W * 4
                 + 2 * F * out_bt * 4 + K * TT * 2 + (2 << 20))
    cp = dict(dimension_semantics=("parallel", "parallel"))
    if vmem_need > 30 * (1 << 20):
        cp["vmem_limit_bytes"] = int(min(vmem_need + (8 << 20), 100 * (1 << 20)))

    return pl.pallas_call(
        kernel,
        out_shape=jax.ShapeDtypeStruct((B, F, n_frames), jnp.float32),
        grid_spec=pltpu.PrefetchScalarGridSpec(
            num_scalar_prefetch=0,
            grid=(B, n_t),
            in_specs=[
                pl.BlockSpec((2 * F_pad, K), lambda b, t: (0, 0)),         # Wt
                pl.BlockSpec((F_pad, 1), lambda b, t: (0, 0)),             # fb
                pl.BlockSpec((None, None, hop_pad, W),
                             lambda b, t: (b, t, 0, 0)),                   # strip
            ],
            out_specs=pl.BlockSpec((None, F, out_bt), lambda b, t: (b, 0, t)),
            scratch_shapes=[pltpu.VMEM((K, TT), jnp.bfloat16)],
        ),
        compiler_params=pltpu.CompilerParams(**cp),
    )(wt, fb, strips)


def _reference_stft(wav, filterbank, *, n_fft, hop_length):
    """Pure-JAX reference (jnp.fft.rfft) matching torchaudio Spectrogram."""
    B, _, T = wav.shape
    x = wav[:, 0, :]
    pad = n_fft // 2
    x = jnp.pad(x, ((0, 0), (pad, pad)), mode="reflect")
    n_frames = 1 + T // hop_length
    starts = jnp.arange(n_frames) * hop_length
    idx = starts[:, None] + jnp.arange(n_fft)[None, :]
    frames = x[:, idx]                                           # (B, time, n_fft)
    n = jnp.arange(n_fft, dtype=jnp.float32)
    window = 0.5 - 0.5 * jnp.cos(2.0 * jnp.pi * n / n_fft)
    spec = jnp.fft.rfft(frames * window, axis=-1)                # (B, time, F)
    mag = jnp.abs(spec).transpose(0, 2, 1)                       # (B, F, time)
    return mag * filterbank[None, :, None]


if __name__ == "__main__":
    n_fft = 64
    hop_length = 16
    F = n_fft // 2 + 1

    key = jax.random.PRNGKey(0)
    k_wav, k_fb = jax.random.split(key)
    wav = jax.random.normal(k_wav, (2, 1, 256), dtype=jnp.float32)
    # deterministic stand-in for nn.Parameter(torch.randn(n_fft//2+1))
    filterbank = jax.random.normal(k_fb, (F,), dtype=jnp.float32)

    out = learnable_stft(wav, filterbank, n_fft=n_fft, hop_length=hop_length)
    out = jax.block_until_ready(out)

    ref = _reference_stft(wav, filterbank, n_fft=n_fft, hop_length=hop_length)
    assert out.shape == (2, F, 1 + 256 // hop_length), out.shape

    # bf16 MXU operands with f32 accumulation: ~1e-2 relative accuracy expected.
    scale = float(jnp.max(jnp.abs(ref)))
    err = float(jnp.max(jnp.abs(out - ref)))
    assert err <= 2e-2 * scale + 1e-4, (err, scale)

    print("KERNEL_OK")
</pallas_src>

<mosaic_0001>
module attributes {stable_mosaic.version = 11 : i64} {
  func.func @kernel(%arg0: i32, %arg1: i32, %arg2: memref<80x64xbf16, #tpu.memory_space<vmem>>, %arg3: memref<40x1xf32, #tpu.memory_space<vmem>>, %arg4: memref<1x1x16x131xf32, #tpu.memory_space<vmem>>, %arg5: memref<1x33x17xf32, #tpu.memory_space<vmem>>, %arg6: memref<64x128xbf16, #tpu.memory_space<vmem>>) attributes {dimension_semantics = [#tpu.dimension_semantics<parallel>, #tpu.dimension_semantics<parallel>], iteration_bounds = array<i64: 2, 1>, scalar_prefetch = 0 : i64, scratch_operands = 1 : i64, tpu.core_type = #tpu.core_type<tc>, window_params = [{pipeline_mode = #tpu.pipeline_mode<synchronous>, transform_indices = @transform_0, window_bounds = array<i64: 80, 64>}, {pipeline_mode = #tpu.pipeline_mode<synchronous>, transform_indices = @transform_1, window_bounds = array<i64: 40, 1>}, {transform_indices = @transform_2, window_bounds = array<i64: 1, 1, 16, 131>}, {transform_indices = @transform_3, window_bounds = array<i64: 1, 33, 17>}]} {
    %c0 = arith.constant 0 : index
    %c0_0 = arith.constant 0 : index
    %c0_1 = arith.constant 0 : index
    %c0_2 = arith.constant 0 : index
    %0 = vector.load %arg4[%c0, %c0_0, %c0_1, %c0_2] : memref<1x1x16x131xf32, #tpu.memory_space<vmem>>, vector<1x1x16x131xf32>
    %1 = vector.shape_cast %0 : vector<1x1x16x131xf32> to vector<16x131xf32>
    %2 = vector.extract_strided_slice %1 {offsets = [0, 0], sizes = [16, 128], strides = [1, 1]} : vector<16x131xf32> to vector<16x128xf32>
    %3 = arith.truncf %2 : vector<16x128xf32> to vector<16x128xbf16>
    %c0_3 = arith.constant 0 : index
    %c0_4 = arith.constant 0 : index
    %4 = vector.load %arg6[%c0_3, %c0_4] : memref<64x128xbf16, #tpu.memory_space<vmem>>, vector<16x128xbf16>
    tpu.vector_store %arg6[%c0_3, %c0_4], %3 {strides = array<i32>} : memref<64x128xbf16, #tpu.memory_space<vmem>>, vector<16x128xbf16>,
    %5 = vector.extract_strided_slice %1 {offsets = [0, 1], sizes = [16, 128], strides = [1, 1]} : vector<16x131xf32> to vector<16x128xf32>
    %6 = arith.truncf %5 : vector<16x128xf32> to vector<16x128xbf16>
    %c16 = arith.constant 16 : index
    %c0_5 = arith.constant 0 : index
    %7 = vector.load %arg6[%c16, %c0_5] : memref<64x128xbf16, #tpu.memory_space<vmem>>, vector<16x128xbf16>
    tpu.vector_store %arg6[%c16, %c0_5], %6 {strides = array<i32>} : memref<64x128xbf16, #tpu.memory_space<vmem>>, vector<16x128xbf16>,
    %8 = vector.extract_strided_slice %1 {offsets = [0, 2], sizes = [16, 128], strides = [1, 1]} : vector<16x131xf32> to vector<16x128xf32>
    %9 = arith.truncf %8 : vector<16x128xf32> to vector<16x128xbf16>
    %c32 = arith.constant 32 : index
    %c0_6 = arith.constant 0 : index
    %10 = vector.load %arg6[%c32, %c0_6] : memref<64x128xbf16, #tpu.memory_space<vmem>>, vector<16x128xbf16>
    tpu.vector_store %arg6[%c32, %c0_6], %9 {strides = array<i32>} : memref<64x128xbf16, #tpu.memory_space<vmem>>, vector<16x128xbf16>,
    %11 = vector.extract_strided_slice %1 {offsets = [0, 3], sizes = [16, 128], strides = [1, 1]} : vector<16x131xf32> to vector<16x128xf32>
    %12 = arith.truncf %11 : vector<16x128xf32> to vector<16x128xbf16>
    %c48 = arith.constant 48 : index
    %c0_7 = arith.constant 0 : index
    %13 = vector.load %arg6[%c48, %c0_7] : memref<64x128xbf16, #tpu.memory_space<vmem>>, vector<16x128xbf16>
    tpu.vector_store %arg6[%c48, %c0_7], %12 {strides = array<i32>} : memref<64x128xbf16, #tpu.memory_space<vmem>>, vector<16x128xbf16>,
    %c0_8 = arith.constant 0 : index
    %c0_9 = arith.constant 0 : index
    %14 = vector.load %arg2[%c0_8, %c0_9] : memref<80x64xbf16, #tpu.memory_space<vmem>>, vector<80x64xbf16>
    %c0_10 = arith.constant 0 : index
    %c0_11 = arith.constant 0 : index
    %15 = vector.load %arg6[%c0_10, %c0_11] : memref<64x128xbf16, #tpu.memory_space<vmem>>, vector<64x128xbf16>
    %cst = arith.constant dense<0.000000e+00> : vector<80x128xf32>
    %16 = tpu.matmul %14, %15, %cst {dimension_numbers = #tpu.dot_dimension_numbers<[1], [0], [0], [1], [0, 0, 1, 1], [], []>} : vector<80x64xbf16>, vector<64x128xbf16>, vector<80x128xf32> -> vector<80x128xf32>
    %17 = vector.extract_strided_slice %16 {offsets = [0, 0], sizes = [40, 128], strides = [1, 1]} : vector<80x128xf32> to vector<40x128xf32>
    %18 = vector.extract_strided_slice %16 {offsets = [40, 0], sizes = [40, 128], strides = [1, 1]} : vector<80x128xf32> to vector<40x128xf32>
    %19 = arith.mulf %17, %17 : vector<40x128xf32>
    %20 = arith.mulf %18, %18 : vector<40x128xf32>
    %21 = arith.addf %19, %20 : vector<40x128xf32>
    %22 = math.sqrt %21 : vector<40x128xf32>
    %c0_12 = arith.constant 0 : index
    %c0_13 = arith.constant 0 : index
    %23 = vector.load %arg3[%c0_12, %c0_13] : memref<40x1xf32, #tpu.memory_space<vmem>>, vector<40x1xf32>
    %24 = vector.broadcast %23 : vector<40x1xf32> to vector<40x128xf32>
    %25 = arith.mulf %22, %24 : vector<40x128xf32>
    %26 = vector.extract_strided_slice %25 {offsets = [0, 0], sizes = [33, 17], strides = [1, 1]} : vector<40x128xf32> to vector<33x17xf32>
    %c0_14 = arith.constant 0 : index
    %c0_15 = arith.constant 0 : index
    %c0_16 = arith.constant 0 : index
    %27 = vector.load %arg5[%c0_14, %c0_15, %c0_16] : memref<1x33x17xf32, #tpu.memory_space<vmem>>, vector<1x33x17xf32>
    %28 = vector.shape_cast %27 : vector<1x33x17xf32> to vector<33x17xf32>
    %29 = vector.shape_cast %26 : vector<33x17xf32> to vector<1x33x17xf32>
    tpu.vector_store %arg5[%c0_14, %c0_15, %c0_16], %29 {strides = array<i32>} : memref<1x33x17xf32, #tpu.memory_space<vmem>>, vector<1x33x17xf32>,
    return
  }
  func.func @transform_0(%arg0: i32, %arg1: i32) -> (i32, i32) {
    %c0_i32 = arith.constant 0 : i32
    %c0_i32_0 = arith.constant 0 : i32
    %c0_i32_1 = arith.constant 0 : i32
    return %c0_i32, %c0_i32_0 : i32, i32
  }
  func.func @transform_1(%arg0: i32, %arg1: i32) -> (i32, i32) {
    %c0_i32 = arith.constant 0 : i32
    %c0_i32_0 = arith.constant 0 : i32
    %c0_i32_1 = arith.constant 0 : i32
    return %c0_i32, %c0_i32_0 : i32, i32
  }
  func.func @transform_2(%arg0: i32, %arg1: i32) -> (i32, i32, i32, i32) {
    %c0_i32 = arith.constant 0 : i32
    %c0_i32_0 = arith.constant 0 : i32
    %c0_i32_1 = arith.constant 0 : i32
    return %arg0, %arg1, %c0_i32, %c0_i32_0 : i32, i32, i32, i32
  }
  func.func @transform_3(%arg0: i32, %arg1: i32) -> (i32, i32, i32) {
    %c0_i32 = arith.constant 0 : i32
    %c0_i32_0 = arith.constant 0 : i32
    return %arg0, %c0_i32, %arg1 : i32, i32, i32
  }
}

</mosaic_0001>

<llo_original>
// kernel: learnable_stft.1
$region0: #{learnable_stft.1}
  #allocation0 [shape = 'u32[]', space=smem, size = 0x4, offset = 0x4, fixed_abs, tag = 'smem constant byte address 0x4 - core index']
  #allocation1 [shape = 'u32[144,128]{1,0:T(1,128)}', space=vmem, size = 0x12000, scoped, tag = 'internal scratch']
  #allocation2 [shape = 'bf16[64,128]{1,0:T(8,128)(2,1)}', space=vmem, size = 0x4000, scoped, tag = 'scratch operand']
  %s0 = inlined_call_operand.vmem [shape: bf16[80,64], index: 0, kind: input, shape index: {}]
  %s1 = inlined_call_operand.vmem [shape: f32[40,1], index: 1, kind: input, shape index: {}]
  %s2 = inlined_call_operand.vmem [shape: f32[2,1,16,131], index: 2, kind: input, shape index: {}]
  %s3 = inlined_call_operand.vmem [shape: f32[2,33,17], index: 3, kind: output, shape index: {}]
  %s4 = sld [smem:[#allocation0]]
  $region45: #{learnable_stft.1} parent=0
    _
  %s6 = ssub.s32 1, %s4
  %s7 = scalar_select 0, %s6, %s4
  loop: start=0, step=1, limit=4
  $region2: #{learnable_stft.1} parent=0 // loop_pre_header
    _
  $region3: #{learnable_stft.1} parent=0 // loop_header
    %s9 = sphi 0, %s13
    %p10 = scmp.ge.s32.totalorder %s9, 4
    %s16 = sphi 0, %s28
    %s17 = sphi 0, %s24
    %s18 = sphi 0, %s16
    %s19 = sphi 0, %s17
    %s20 = sphi 0, %s18
    %s21 = sphi 0, %s19
    %s29 = sphi 0, %s29
    %s31 = sphi 0, %s29
    %s32 = sphi 0, %s31
    %s46 = sphi 0, %s32
    %s50 = sphi 0, %s50
    %s52 = sphi 0, %s50
    %s53 = sphi 0, %s52
    %s67 = sphi 0, %s53
    %s75 = sphi 0, %s77
    %s78 = sphi 0, %s75
    %s79 = sphi 0, %s78
    %s95 = sphi 0, %s79
    %s103 = sphi 0, %s105
    %s106 = sphi 0, %s103
    %s107 = sphi 0, %s106
    %s123 = sphi 0, %s107
  $region4: #{learnable_stft.1} parent=0 // loop_header_branch
    %12 = sbr.rel (%p10) target = $region8
  $region5: #{learnable_stft.1} parent=0 // loop_body
    %s14 = ssub.s32 %s9, 1
    %s15 = ssub.s32 %s9, 2
    %s22 = sadd.s32 1, %s17
    %p23 = scmp.ge.s32.totalorder %s22, 1
    %s24 = scalar_select %p23, 0, %s22
    %s25 = sadd.s32 1, %s16
    %s26 = scalar_select %p23, %s25, %s16
    %p27 = scmp.ge.s32.totalorder %s26, 2
    %s28 = scalar_select %p27, 0, %s26
    %s30 = sadd.s32 %s29, 1
    %p33 = scmp.eq.s32.totalorder %s9, 1
    %p34 = scmp.ne.s32.totalorder %s29, %s31
    %p35 = scmp.eq.s32.totalorder %s9, 0
    %p36 = por %p34, %p35
    %p37 = scmp.ne.s32.totalorder %s29, %s31
    %p38 = scmp.eq.s32.totalorder %s14, 1
    %p39 = por %p37, %p38
    %p40 = scmp.ne.s32.totalorder %s31, %s32
    %p41 = scmp.eq.s32.totalorder %s14, 0
    %p42 = por %p40, %p41
    %p43 = scmp.ne.s32.totalorder %s31, %s32
    %p44 = scmp.eq.s32.totalorder %s15, 1
    %p45 = por %p43, %p44
    %p47 = scmp.ne.s32.totalorder %s32, %s46
    %p48 = scmp.eq.s32.totalorder %s15, 0
    %p49 = por %p47, %p48
    %s51 = sadd.s32 %s50, 1
    %p54 = scmp.eq.s32.totalorder %s9, 1
    %p55 = scmp.ne.s32.totalorder %s50, %s52
    %p56 = scmp.eq.s32.totalorder %s9, 0
    %p57 = por %p55, %p56
    %p58 = scmp.ne.s32.totalorder %s50, %s52
    %p59 = scmp.eq.s32.totalorder %s14, 1
    %p60 = por %p58, %p59
    %p61 = scmp.ne.s32.totalorder %s52, %s53
    %p62 = scmp.eq.s32.totalorder %s14, 0
    %p63 = por %p61, %p62
    %p64 = scmp.ne.s32.totalorder %s52, %s53
    %p65 = scmp.eq.s32.totalorder %s15, 1
    %p66 = por %p64, %p65
    %p68 = scmp.ne.s32.totalorder %s53, %s67
    %p69 = scmp.eq.s32.totalorder %s15, 0
    %p70 = por %p68, %p69
    %s71 = ssub.s32 %s16, %s28
    %s72 = ssub.s32 %s17, %s24
    %s73 = sor.u32 %s71, %s72
    %p74 = scmp.eq.s32.totalorder %s73, 0
    %s76 = sadd.s32 %s75, 1
    %s77 = scalar_select %p74, %s75, %s76
    %p80 = pneg %p74
    %p81 = scmp.eq.s32.totalorder %s9, 1
    %p82 = por %p80, %p81
    %p83 = scmp.ne.s32.totalorder %s75, %s78
    %p84 = scmp.eq.s32.totalorder %s9, 0
    %p85 = por %p83, %p84
    %p86 = scmp.ne.s32.totalorder %s75, %s78
    %p87 = scmp.eq.s32.totalorder %s14, 1
    %p88 = por %p86, %p87
    %p89 = scmp.ne.s32.totalorder %s78, %s79
    %p90 = scmp.eq.s32.totalorder %s14, 0
    %p91 = por %p89, %p90
    %p92 = scmp.ne.s32.totalorder %s78, %s79
    %p93 = scmp.eq.s32.totalorder %s15, 1
    %p94 = por %p92, %p93
    %p96 = scmp.ne.s32.totalorder %s79, %s95
    %p97 = scmp.eq.s32.totalorder %s15, 0
    %p98 = por %p96, %p97
    %s99 = ssub.s32 %s16, %s28
    %s100 = ssub.s32 %s17, %s24
    %s101 = sor.u32 %s99, %s100
    %p102 = scmp.eq.s32.totalorder %s101, 0
    %s104 = sadd.s32 %s103, 1
    %s105 = scalar_select %p102, %s103, %s104
    %p108 = pneg %p102
    %p109 = scmp.eq.s32.totalorder %s9, 1
    %p110 = por %p108, %p109
    %p111 = scmp.ne.s32.totalorder %s103, %s106
    %p112 = scmp.eq.s32.totalorder %s9, 0
    %p113 = por %p111, %p112
    %p114 = scmp.ne.s32.totalorder %s103, %s106
    %p115 = scmp.eq.s32.totalorder %s14, 1
    %p116 = por %p114, %p115
    %p117 = scmp.ne.s32.totalorder %s106, %s107
    %p118 = scmp.eq.s32.totalorder %s14, 0
    %p119 = por %p117, %p118
    %p120 = scmp.ne.s32.totalorder %s106, %s107
    %p121 = scmp.eq.s32.totalorder %s15, 1
    %p122 = por %p120, %p121
    %p124 = scmp.ne.s32.totalorder %s107, %s123
    %p125 = scmp.eq.s32.totalorder %s15, 0
    %p126 = por %p124, %p125
    %p127 = scmp.le.s32.totalorder 1, %s9
    %p128 = scmp.lt.s32.totalorder %s9, 3
    %p129 = pnand %p127, %p128
    %p130 = pneg %p129
    // Predicated region
    $region9: #{learnable_stft.1} parent=5 // pred_check
      _
    $region10: #{learnable_stft.1} parent=5 // pred_check_branch
      %132 = sbr.rel (%p129) target = $region12
    $region11: #{learnable_stft.1} parent=5 // pred_region
      %s133 = ssub.s32 %s9, 1
      // Predicated region
      $region13: #{learnable_stft.1} parent=11 // pred_check
        %p134 = pneg %p42
      $region14: #{learnable_stft.1} parent=11 // pred_check_branch
        %136 = sbr.rel (%p134) target = $region16
      $region15: #{learnable_stft.1} parent=11 // pred_region
        _
      $region16: #{learnable_stft.1} parent=11 // pred_fallthru
        _
      // Predicated region
      $region17: #{learnable_stft.1} parent=11 // pred_check
        %p137 = pneg %p63
      $region18: #{learnable_stft.1} parent=11 // pred_check_branch
        %139 = sbr.rel (%p137) target = $region20
      $region19: #{learnable_stft.1} parent=11 // pred_region
        _
      $region20: #{learnable_stft.1} parent=11 // pred_fallthru
        _
    $region12: #{learnable_stft.1} parent=5 // pred_fallthru
      _
    %p140 = scmp.lt.s32.totalorder %s9, 2
    // Predicated region
    $region21: #{learnable_stft.1} parent=5 // pred_check
      %p141 = pneg %p140
    $region22: #{learnable_stft.1} parent=5 // pred_check_branch
      %143 = sbr.rel (%p141) target = $region24
    $region23: #{learnable_stft.1} parent=5 // pred_region
      // Predicated region
      $region25: #{learnable_stft.1} parent=23 // pred_check
        %p144 = pneg %p85
      $region26: #{learnable_stft.1} parent=23 // pred_check_branch
        %146 = sbr.rel (%p144) target = $region28
      $region27: #{learnable_stft.1} parent=23 // pred_region
        %p147 = scmp.lt.s32.totalorder %s16, 1
        %s148 = scalar_select %p147, %s16, 1
        %p149 = scmp.lt.s32.totalorder %s17, 0
        %s150 = scalar_select %p149, %s17, 0
        %s151 = smul.addr %s150, 4
        %s152 = smul.addr %s148, 4
        %s153 = sadd.s32 %s151, %s152
        %s154 = smul.addr %s153, 8
        %s155 = scalar_lea.vmem %s2, %s154
      $region28: #{learnable_stft.1} parent=23 // pred_fallthru
        _
    $region24: #{learnable_stft.1} parent=5 // pred_fallthru
      _
    %p156 = scmp.le.s32.totalorder 1, %s9
    %p157 = scmp.lt.s32.totalorder %s9, 3
    %p158 = pnand %p156, %p157
    %p159 = pneg %p158
    // Predicated region
    $region29: #{learnable_stft.1} parent=5 // pred_check
      _
    $region30: #{learnable_stft.1} parent=5 // pred_check_branch
      %161 = sbr.rel (%p158) target = $region32
    $region31: #{learnable_stft.1} parent=5 // pred_region
      %s162 = ssub.s32 %s9, 1
      %p163 = pneg %p42
      %p164 = pneg %p39
      %p165 = pneg %p63
      %p166 = pneg %p60
      %p167 = scmp.lt.s32.totalorder %s18, 1
      %s168 = scalar_select %p167, %s18, 1
      %p169 = scmp.lt.s32.totalorder %s19, 0
      %s170 = scalar_select %p169, %s19, 0
      %s171 = smul.addr %s170, 4
      %s172 = smul.addr %s168, 4
      %s173 = sadd.s32 %s171, %s172
      %s174 = smul.addr %s173, 8
      %s175 = scalar_lea.vmem %s2, %s174
      %p176 = pneg %p91
      %p177 = pneg %p88
      %p178 = pneg %p119
      %p179 = pneg %p116
      %p180 = scmp.lt.s32.totalorder %s18, 1
      %s181 = scalar_select %p180, %s18, 1
      %p182 = scmp.lt.s32.totalorder %s19, 0
      %s183 = scalar_select %p182, %s19, 0
      %s184 = smul.addr %s181, 5
      %s185 = sadd.s32 %s183, %s184
      %s186 = smul.addr %s185, 8
      %s187 = scalar_lea.vmem %s3, %s186
      %p188 = scmp.lt.s32.totalorder %s18, 1
      %s189 = scalar_select %p188, %s18, 1
      %p190 = scmp.lt.s32.totalorder %s19, 0
      %s191 = scalar_select %p190, %s19, 0
      %s192 = smul.addr %s191, 4
      %s193 = smul.addr %s189, 4
      %s194 = sadd.s32 %s192, %s193
      %s195 = smul.addr %s194, 8
      %s196 = scalar_lea.vmem %s2, %s195
      %p197 = scmp.lt.s32.totalorder %s18, 1
      %s198 = scalar_select %p197, %s18, 1
      %p199 = scmp.lt.s32.totalorder %s19, 0
      %s200 = scalar_select %p199, %s19, 0
      %s201 = smul.addr %s198, 5
      %s202 = sadd.s32 %s200, %s201
      %s203 = smul.addr %s202, 8
      %s204 = scalar_lea.vmem %s3, %s203
      %v206 = vld [vmem:[%s196] sm:$0xff]
      %v207 = vld [vmem:[%s196 + $0x8] sm:$0xff]
      %v208 = vld [vmem:[%s196 + $0x10] sm:$0xff]
      %v209 = vld [vmem:[%s196 + $0x18] sm:$0xff]
      %v210 = vpack.c.bf16 %v208, %v206
      %v212 = vunpack.c.l.b16 %v210
      %v213 = vunpack.c.h.b16 %v210
      %v214 = vpack.c.b16 %v212, %v212
      %v215 = vpack.c.b16 %v213, %v213
      %218 = vst [vmem:[#allocation2] sm:$0xf] %v214
      %219 = vst [vmem:[#allocation2 + $0x4] sm:$0xf] %v215
      %v220 = vpack.c.bf16 %v209, %v207
      %v222 = vunpack.c.l.b16 %v220
      %v223 = vunpack.c.h.b16 %v220
      %v224 = vpack.c.b16 %v222, %v212
      %v225 = vpack.c.b16 %v223, %v213
      %226 = vrot.lane.b32.xlu0 %v224, 127
      %v227 = vpop.permute.xlu0 %226
      %228 = vrot.lane.b32.xlu0 %v225, 127
      %v229 = vpop.permute.xlu0 %228
      %v230 = vrot.slane %v227, 4
      %v231 = vrot.slane %v229, 4
      %vm232 = vcmask 1039360
      %v233 = vsel %vm232, %v227, %v230
      %v234 = vsel %vm232, %v229, %v231
      %237 = vst [vmem:[#allocation2 + $0x8] sm:$0xf] %v233
      %238 = vst [vmem:[#allocation2 + $0xc] sm:$0xf] %v234
      %239 = vrot.lane.b32.xlu0 %v224, 126
      %v240 = vpop.permute.xlu0 %239
      %241 = vrot.lane.b32.xlu0 %v225, 126
      %v242 = vpop.permute.xlu0 %241
      %v243 = vrot.slane %v240, 4
      %v244 = vrot.slane %v242, 4
      %vm245 = vcmask 1031168
      %v246 = vsel %vm245, %v240, %v243
      %v247 = vsel %vm245, %v242, %v244
      %250 = vst [vmem:[#allocation2 + $0x10] sm:$0xf] %v246
      %251 = vst [vmem:[#allocation2 + $0x14] sm:$0xf] %v247
      %252 = vrot.lane.b32.xlu0 %v224, 125
      %v253 = vpop.permute.xlu0 %252
      %254 = vrot.lane.b32.xlu0 %v225, 125
      %v255 = vpop.permute.xlu0 %254
      %v256 = vrot.slane %v253, 4
      %v257 = vrot.slane %v255, 4
      %vm258 = vcmask 1022976
      %v259 = vsel %vm258, %v253, %v256
      %v260 = vsel %vm258, %v255, %v257
      %263 = vst [vmem:[#allocation2 + $0x18] sm:$0xf] %v259
      %264 = vst [vmem:[#allocation2 + $0x1c] sm:$0xf] %v260
      %v265 = vld [vmem:[%s0] sm:$0xf]
      %v266 = vld [vmem:[%s0 + $0x4] sm:$0xf]
      %v267 = vld [vmem:[%s0 + $0x8] sm:$0xf]
      %v268 = vld [vmem:[%s0 + $0xc] sm:$0xf]
      %v269 = vld [vmem:[%s0 + $0x10] sm:$0xf]
      %v270 = vld [vmem:[%s0 + $0x14] sm:$0xf]
      %v271 = vld [vmem:[%s0 + $0x18] sm:$0xf]
      %v272 = vld [vmem:[%s0 + $0x1c] sm:$0xf]
      %v273 = vld [vmem:[%s0 + $0x20] sm:$0xf]
      %v274 = vld [vmem:[%s0 + $0x24] sm:$0xf]
      %v275 = vld [vmem:[#allocation2] sm:$0xf]
      %v276 = vld [vmem:[#allocation2 + $0x4] sm:$0xf]
      %v277 = vld [vmem:[#allocation2 + $0x8] sm:$0xf]
      %v278 = vld [vmem:[#allocation2 + $0xc] sm:$0xf]
      %v279 = vld [vmem:[#allocation2 + $0x10] sm:$0xf]
      %v280 = vld [vmem:[#allocation2 + $0x14] sm:$0xf]
      %v281 = vld [vmem:[#allocation2 + $0x18] sm:$0xf]
      %v282 = vld [vmem:[#allocation2 + $0x1c] sm:$0xf]
      %v293 = vunpack.c.l.b16 %v265
      %v294 = vunpack.c.l.b16 %v266
      %v295 = vunpack.c.l.b16 %v267
      %v296 = vunpack.c.l.b16 %v268
      %v297 = vunpack.c.l.b16 %v269
      %v298 = vunpack.c.l.b16 %v270
      %v299 = vunpack.c.l.b16 %v271
      %v300 = vunpack.c.l.b16 %v272
      %v301 = vunpack.c.l.b16 %v273
      %v302 = vunpack.c.l.b16 %v274
      %v303 = vpack.c.b16 %v294, %v293
      %v304 = vpack.c.b16 %v296, %v295
      %v305 = vpack.c.b16 %v298, %v297
      %v306 = vpack.c.b16 %v300, %v299
      %v307 = vpack.c.b16 %v302, %v301
      %v316 = vunpack.c.l.b16 %v275
      %v317 = vunpack.c.l.b16 %v276
      %v318 = vunpack.c.l.b16 %v277
      %v319 = vunpack.c.l.b16 %v278
      %v320 = vunpack.c.l.b16 %v279
      %v321 = vunpack.c.l.b16 %v280
      %v322 = vunpack.c.l.b16 %v281
      %v323 = vunpack.c.l.b16 %v282
      %v324 = vpack.c.b16 %v317, %v316
      %v325 = vpack.c.b16 %v319, %v318
      %v326 = vpack.c.b16 %v321, %v320
      %v327 = vpack.c.b16 %v323, %v322
      %vm332 = vcmask 523264
      %v334 = vsel %vm332, %v303, 0
      %v337 = vsel %vm332, %v304, 0
      %v340 = vsel %vm332, %v305, 0
      %v343 = vsel %vm332, %v306, 0
      %v346 = vsel %vm332, %v307, 0
      %348 = vmatprep.subr.bf16.mxu0 0
      %349 = vmatpush1.bf16.msra.mxu0 0
      %350 = vmatprep.subr.bf16.mxu0 0
      %351 = vmatpush1.bf16.msra.mxu0 0
      %352 = vmatprep.subr.bf16.mxu0 0
      %353 = vmatpush1.bf16.msra.mxu0 0
      %354 = vmatprep.subr.bf16.mxu0 0
      %355 = vmatpush1.bf16.msra.mxu0 0
      %356 = vmatprep.subr.bf16.mxu0 0
      %357 = vmatpush1.bf16.msra.mxu0 %v327
      %358 = vmatprep.subr.bf16.mxu0 0
      %359 = vmatpush1.bf16.msra.mxu0 %v326
      %360 = vmatprep.subr.bf16.mxu0 0
      %361 = vmatpush1.bf16.msra.mxu0 %v325
      %362 = vmatprep.subr.bf16.mxu0 0
      %363 = vmatpush1.bf16.msra.mxu0 %v324
      %364 = vmatprep.subr.bf16.mxu0 0
      %365 = vmatpush2.bf16.msra.mxu0 0
      %366 = vmatprep.subr.bf16.mxu0 0
      %367 = vmatpush2.bf16.msra.mxu0 0
      %368 = vmatprep.subr.bf16.mxu0 0
      %369 = vmatpush2.bf16.msra.mxu0 0
      %370 = vmatprep.subr.bf16.mxu0 0
      %371 = vmatpush2.bf16.msra.mxu0 0
      %372 = vmatprep.subr.bf16.mxu0 0
      %373 = vmatpush2.bf16.msra.mxu0 0
      %374 = vmatprep.subr.bf16.mxu0 0
      %375 = vmatpush2.bf16.msra.mxu0 0
      %376 = vmatprep.subr.bf16.mxu0 0
      %377 = vmatpush2.bf16.msra.mxu0 0
      %378 = vmatprep.subr.bf16.mxu0 0
      %379 = vmatpush2.bf16.msra.mxu0 0
      %380 = vmatprep.mubr.bf16.mxu0 0
      %381 = vmatmul.mubr.bf16.gmra.mxu0 %v334
      %v382 = vpop.f32.mrf.mxu0
      %v383 = vadd.f32 0.0, %v382
      %v384 = vpop.f32.mrf.mxu0
      %v385 = vpop.f32.mrf.mxu0
      %v386 = vadd.f32 0.0, %v385
      %v387 = vpop.f32.mrf.mxu0
      %388 = vmatprep.mubr.bf16.mxu0 0
      %389 = vmatmul.mubr.bf16.gmra.mxu0 %v337
      %v390 = vpop.f32.mrf.mxu0
      %v391 = vadd.f32 0.0, %v390
      %v392 = vpop.f32.mrf.mxu0
      %v393 = vpop.f32.mrf.mxu0
      %v394 = vadd.f32 0.0, %v393
      %v395 = vpop.f32.mrf.mxu0
      %396 = vmatprep.mubr.bf16.mxu0 0
      %397 = vmatmul.mubr.bf16.gmra.mxu0 %v340
      %v398 = vpop.f32.mrf.mxu0
      %v399 = vadd.f32 0.0, %v398
      %v400 = vpop.f32.mrf.mxu0
      %v401 = vpop.f32.mrf.mxu0
      %v402 = vadd.f32 0.0, %v401
      %v403 = vpop.f32.mrf.mxu0
      %404 = vmatprep.mubr.bf16.mxu0 0
      %405 = vmatmul.mubr.bf16.gmra.mxu0 %v343
      %v406 = vpop.f32.mrf.mxu0
      %v407 = vadd.f32 0.0, %v406
      %v408 = vpop.f32.mrf.mxu0
      %v409 = vpop.f32.mrf.mxu0
      %v410 = vadd.f32 0.0, %v409
      %v411 = vpop.f32.mrf.mxu0
      %412 = vmatprep.mubr.bf16.mxu0 0
      %413 = vmatmul.mubr.bf16.gmra.mxu0 %v346
      %v414 = vpop.f32.mrf.mxu0
      %v415 = vadd.f32 0.0, %v414
      %v416 = vpop.f32.mrf.mxu0
      %v417 = vpop.f32.mrf.mxu0
      %v418 = vadd.f32 0.0, %v417
      %v419 = vpop.f32.mrf.mxu0
      %420 = vdwg.mxu0
      %v421 = vmul.f32 %v383, %v383
      %v422 = vmul.f32 %v386, %v386
      %v423 = vmul.f32 %v391, %v391
      %v424 = vmul.f32 %v394, %v394
      %v425 = vmul.f32 %v399, %v399
      %v426 = vmul.f32 %v402, %v402
      %v427 = vmul.f32 %v407, %v407
      %v428 = vmul.f32 %v410, %v410
      %v429 = vmul.f32 %v415, %v415
      %v430 = vmul.f32 %v418, %v418
      %v431 = vadd.f32 %v421, %v426
      %v432 = vadd.f32 %v422, %v427
      %v433 = vadd.f32 %v423, %v428
      %v434 = vadd.f32 %v424, %v429
      %v435 = vadd.f32 %v425, %v430
      %v436 = vrsqrt.pop %v431
      %v437 = vmul.f32 %v431, %v436
      %vm438 = vcmp.eq.f32.partialorder %v431, inf
      %v439 = vsel %vm438, %v431, %v437
      %vm440 = vcmp.eq.f32.partialorder %v431, 0.0
      %v441 = vand.u32 %v431, 2147483648
      %v442 = vsel %vm440, %v441, %v439
      %v443 = vrsqrt.pop %v432
      %v444 = vmul.f32 %v432, %v443
      %vm445 = vcmp.eq.f32.partialorder %v432, inf
      %v446 = vsel %vm445, %v432, %v444
      %vm447 = vcmp.eq.f32.partialorder %v432, 0.0
      %v448 = vand.u32 %v432, 2147483648
      %v449 = vsel %vm447, %v448, %v446
      %v450 = vrsqrt.pop %v433
      %v451 = vmul.f32 %v433, %v450
      %vm452 = vcmp.eq.f32.partialorder %v433, inf
      %v453 = vsel %vm452, %v433, %v451
      %vm454 = vcmp.eq.f32.partialorder %v433, 0.0
      %v455 = vand.u32 %v433, 2147483648
      %v456 = vsel %vm454, %v455, %v453
      %v457 = vrsqrt.pop %v434
      %v458 = vmul.f32 %v434, %v457
      %vm459 = vcmp.eq.f32.partialorder %v434, inf
      %v460 = vsel %vm459, %v434, %v458
      %vm461 = vcmp.eq.f32.partialorder %v434, 0.0
      %v462 = vand.u32 %v434, 2147483648
      %v463 = vsel %vm461, %v462, %v460
      %v464 = vrsqrt.pop %v435
      %v465 = vmul.f32 %v435, %v464
      %vm466 = vcmp.eq.f32.partialorder %v435, inf
      %v467 = vsel %vm466, %v435, %v465
      %vm468 = vcmp.eq.f32.partialorder %v435, 0.0
      %v469 = vand.u32 %v435, 2147483648
      %v470 = vsel %vm468, %v469, %v467
      %v471 = vld [vmem:[%s1] sm:$0xff]
      %v472 = vld [vmem:[%s1 + $0x8] sm:$0xff]
      %v473 = vld [vmem:[%s1 + $0x10] sm:$0xff]
      %v474 = vld [vmem:[%s1 + $0x18] sm:$0xff]
      %v475 = vld [vmem:[%s1 + $0x20] sm:$0xff]
      %477 = vset.pattern.permute.xlu0 0
      %478 = vperm.xlu0 %477, %v471
      %v479 = vpop.permute.xlu0 %478
      %482 = vset.pattern.permute.xlu0 0
      %483 = vperm.xlu0 %482, %v472
      %v484 = vpop.permute.xlu0 %483
      %487 = vset.pattern.permute.xlu0 0
      %488 = vperm.xlu0 %487, %v473
      %v489 = vpop.permute.xlu0 %488
      %492 = vset.pattern.permute.xlu0 0
      %493 = vperm.xlu0 %492, %v474
      %v494 = vpop.permute.xlu0 %493
      %497 = vset.pattern.permute.xlu0 0
      %498 = vperm.xlu0 %497, %v475
      %v499 = vpop.permute.xlu0 %498
      %v501 = vmul.f32 %v442, %v479
      %v502 = vmul.f32 %v449, %v484
      %v503 = vmul.f32 %v456, %v489
      %v504 = vmul.f32 %v463, %v494
      %v505 = vmul.f32 %v470, %v499
      %vm506 = vcmask 138240
      %507 = vst.msk [vmem:[%s204] sm:$0xff] %vm506, %v501
      %508 = vst.msk [vmem:[%s204 + $0x8] sm:$0xff] %vm506, %v502
      %509 = vst.msk [vmem:[%s204 + $0x10] sm:$0xff] %vm506, %v503
      %510 = vst.msk [vmem:[%s204 + $0x18] sm:$0xff] %vm506, %v504
      %vm511 = vcmask 131072
      %512 = vst.msk [vmem:[%s204 + $0x20] sm:$0x1] %vm511, %v505
      %p513 = scmp.lt.s32.totalorder %s18, 1
      %s514 = scalar_select %p513, %s18, 1
      %p515 = scmp.lt.s32.totalorder %s19, 0
      %s516 = scalar_select %p515, %s19, 0
      %s517 = smul.addr %s514, 5
      %s518 = sadd.s32 %s516, %s517
      %s519 = smul.addr %s518, 8
      %s520 = scalar_lea.vmem %s3, %s519
      // Predicated region
      $region33: #{learnable_stft.1} parent=31 // pred_check
        %p521 = pneg %p116
      $region34: #{learnable_stft.1} parent=31 // pred_check_branch
        %523 = sbr.rel (%p521) target = $region36
      $region35: #{learnable_stft.1} parent=31 // pred_region
        _
      $region36: #{learnable_stft.1} parent=31 // pred_fallthru
        _
    $region32: #{learnable_stft.1} parent=5 // pred_fallthru
      _
    %p524 = scmp.le.s32.totalorder 2, %s9
    // Predicated region
    $region37: #{learnable_stft.1} parent=5 // pred_check
      %p525 = pneg %p524
    $region38: #{learnable_stft.1} parent=5 // pred_check_branch
      %527 = sbr.rel (%p525) target = $region40
    $region39: #{learnable_stft.1} parent=5 // pred_region
      %s528 = ssub.s32 %s9, 2
      // Predicated region
      $region41: #{learnable_stft.1} parent=39 // pred_check
        %p529 = pneg %p122
      $region42: #{learnable_stft.1} parent=39 // pred_check_branch
        %531 = sbr.rel (%p529) target = $region44
      $region43: #{learnable_stft.1} parent=39 // pred_region
        %p532 = scmp.lt.s32.totalorder %s20, 1
        %s533 = scalar_select %p532, %s20, 1
        %p534 = scmp.lt.s32.totalorder %s21, 0
        %s535 = scalar_select %p534, %s21, 0
        %s536 = smul.addr %s533, 5
        %s537 = sadd.s32 %s535, %s536
        %s538 = smul.addr %s537, 8
        %s539 = scalar_lea.vmem %s3, %s538
      $region44: #{learnable_stft.1} parent=39 // pred_fallthru
        _
    $region40: #{learnable_stft.1} parent=5 // pred_fallthru
      _
  $region6: #{learnable_stft.1} parent=0 // loop_footer
    %s13 = sadd.s32 1, %s9
  $region7: #{learnable_stft.1} parent=0 // loop_footer_branch
    %8 = sbr.rel target = $region3
  $region8: #{learnable_stft.1} parent=0 // loop_exit
    _

</llo_original>
